<compile_context>
chip_gen: v7x
topology: tpu7x:2x2x1
jax: 0.10.0
libtpu: 0.0.40
codegen_flags: <defaults>
</compile_context>

<pallas_src>
import jax
import jax.numpy as jnp
from jax.experimental import pallas as pl
from jax.experimental.pallas import tpu as pltpu


def _round_up(x, m):
    return (x + m - 1) // m * m


def _pack_layout(B, H, W):
    P = max(1, 128 // W)                 # maps packed per 128-lane row
    G = -(-B // P)                       # groups == grid steps
    B_pad = G * P
    H_pad = _round_up(H, 8)
    W_lane = _round_up(P * W, 128)
    return P, G, B_pad, H_pad, W_lane


def _make_group_conv_kernel(H_pad, W_lane, kh, kw):
    """Kernel over one packed group tile of shape (H_pad, W_lane)."""

    def kernel(w_ref, b_ref, x_ref, o_ref):
        # Single aligned load of the packed group tile (P maps side by side).
        x = x_ref[...]                                    # (H_pad, W_lane) f32

        # Stage every scalar operand once, before the unrolled tap loop.
        w = [w_ref[i] for i in range(kh * kw)]
        bias = b_ref[0]

        # Hoisted lane rolls: one per b = 1..kw-1, reused for every a.
        # Rolls run on the XLU slot (otherwise idle here) and keep all vector
        # loads (8,128)-aligned.
        x_lane = [x]
        for b in range(1, kw):
            x_lane.append(pltpu.roll(x, shift=W_lane - b, axis=1))

        # Tap (0,0) fused with the bias: no zero fill, no trailing bias add.
        acc = x * w[0] + bias

        for a in range(kh):                               # static -> unrolled
            for b in range(kw):
                if a == 0 and b == 0:
                    continue
                shifted = x_lane[b]
                if a:
                    shifted = pltpu.roll(shifted, shift=H_pad - a, axis=0)
                acc = acc + shifted * w[a * kw + b]

        # Full-tile, lane-dense, unmasked store. Rows >= OH and columns past
        # each stripe's valid OW hold wraparound values; the wrapper crop
        # removes them.
        o_ref[...] = acc

    return kernel


def conv2d_pallas_packed(xb, weights, bias):
    """Run the conv kernel on the lane-packed layout.

    Returns (out_packed, layout) where out_packed has shape (G, H_pad, W_lane).
    Downstream consumers that can read the packed layout should use this
    directly and skip the unpack/crop.
    """
    B, H, W = xb.shape
    kh, kw = weights.shape
    OH, OW = H - kh + 1, W - kw + 1
    assert kh <= H and kw <= W, "kernel larger than input"
    # Packing is only safe because a valid output column never reads past its
    # own stripe: j + b <= (OW - 1) + (kw - 1) = W - 1.
    assert OW + kw - 1 <= W

    P, G, B_pad, H_pad, W_lane = _pack_layout(B, H, W)

    xb = xb.astype(jnp.float32)
    if B_pad != B or H_pad != H:
        xb = jnp.pad(xb, ((0, B_pad - B), (0, H_pad - H), (0, 0)))
    # Compact pack: x_packed[g, i, p*W + j] = xb[g*P + p, i, j]. One XLA
    # reshuffle of the original byte count -- no 8x zero inflation in HBM.
    x_packed = xb.reshape(G, P, H_pad, W).transpose(0, 2, 1, 3).reshape(G, H_pad, P * W)
    if W_lane != P * W:
        x_packed = jnp.pad(x_packed, ((0, 0), (0, 0), (0, W_lane - P * W)))

    w_flat = weights.astype(jnp.float32).reshape(kh * kw)   # 1-D SMEM: no (8,128) word padding
    b_flat = bias.astype(jnp.float32).reshape(1)

    kernel = _make_group_conv_kernel(H_pad, W_lane, kh, kw)

    out_packed = pl.pallas_call(
        kernel,
        out_shape=jax.ShapeDtypeStruct((G, H_pad, W_lane), jnp.float32),
        grid=(G,),
        in_specs=[
            # Tiny scalar operands live untiled in SMEM and are staged once
            # for the whole grid (scalar prefetch would be the belt-and-braces
            # alternative; at 40 bytes it makes no measurable difference).
            pl.BlockSpec(memory_space=pltpu.SMEM),                 # weights (kh*kw,)
            pl.BlockSpec(memory_space=pltpu.SMEM),                 # bias (1,)
            # One packed group (P maps) per grid step.
            # (For very large G with per-step compute << DMA latency, a deeper
            #  pipeline via pipeline_mode=pl.Buffered(3) is the next lever.)
            pl.BlockSpec((None, H_pad, W_lane), lambda g: (g, 0, 0)),
        ],
        out_specs=pl.BlockSpec((None, H_pad, W_lane), lambda g: (g, 0, 0)),
        compiler_params=pltpu.CompilerParams(
            dimension_semantics=("parallel",),   # independent groups -> megacore/v7x shardable
        ),
    )(w_flat, b_flat, x_packed)

    return out_packed, (P, G, B_pad, H_pad, W_lane)


def conv2d_pallas_batched(xb, weights, bias):
    """Batched conv: xb (B, H, W) f32, weights (kh, kw), bias (1,) -> (B, OH, OW)."""
    B, H, W = xb.shape
    kh, kw = weights.shape
    OH, OW = H - kh + 1, W - kw + 1

    out_packed, (P, G, B_pad, H_pad, _) = conv2d_pallas_packed(xb, weights, bias)

    # Unpack + crop to the valid region (single XLA reshuffle, outside the
    # kernel). Consumers that accept the packed layout can skip this entirely.
    out = out_packed[:, :, :P * W].reshape(G, H_pad, P, W).transpose(0, 2, 1, 3)
    out = out.reshape(B_pad, H_pad, W)
    return out[:B, :OH, :OW]


def conv2d_pallas(x, weights, bias):
    """Single-map forward matching the PyTorch module: x (H, W) -> (OH, OW)."""
    return conv2d_pallas_batched(x[None], weights, bias)[0]


def conv2d_reference(x, weights, bias):
    """Pure-JAX reference matching the PyTorch loop semantics."""
    H, W = x.shape
    kh, kw = weights.shape
    OH, OW = H - kh + 1, W - kw + 1
    acc = jnp.zeros((OH, OW), dtype=jnp.float32)
    for a in range(kh):
        for b in range(kw):
            acc = acc + x[a:a + OH, b:b + OW] * weights[a, b]
    return acc + bias[0]


if __name__ == "__main__":
    key = jax.random.PRNGKey(0)
    k_x, k_w = jax.random.split(key)

    # 3x3 learnable kernel on 16x16 maps. B=16 so that P = 128 // 16 = 8 maps
    # pack exactly into the 128-lane width with zero padding, and the grid has
    # G = 2 parallel steps (both v7x TensorCores get work).
    B, H, W = 16, 16, 16
    kh, kw = 3, 3

    xb = jax.random.normal(k_x, (B, H, W), dtype=jnp.float32)
    weights = jax.random.normal(k_w, (kh, kw), dtype=jnp.float32)   # ~ torch.randn(kernel_size)
    bias = jnp.zeros((1,), dtype=jnp.float32)                       # ~ torch.zeros(1)

    out = jax.block_until_ready(conv2d_pallas_batched(xb, weights, bias))
    assert out.shape == (B, H - kh + 1, W - kw + 1), out.shape

    ref = jnp.stack([conv2d_reference(xb[i], weights, bias) for i in range(B)])
    assert jnp.allclose(out, ref, atol=1e-5, rtol=1e-5), "batched mismatch vs reference"

    # Exact module example: X is 3x3 with a 2x2 kernel, single map. Exercises
    # the generic padding path (H 3->8 sublanes, stripe width 3, lanes 126->128).
    X = jnp.array([[0.0, 1.0, 2.0], [3.0, 4.0, 5.0], [6.0, 7.0, 8.0]], dtype=jnp.float32)
    K = jax.random.normal(jax.random.PRNGKey(1), (2, 2), dtype=jnp.float32)
    out1 = jax.block_until_ready(conv2d_pallas(X, K, bias))
    ref1 = conv2d_reference(X, K, bias)
    assert out1.shape == (2, 2), out1.shape
    assert jnp.allclose(out1, ref1, atol=1e-5, rtol=1e-5), "single-map mismatch vs reference"

    print("KERNEL_OK")
</pallas_src>

<mosaic_0001>
module attributes {stable_mosaic.version = 11 : i64} {
  func.func @kernel(%arg0: i32, %arg1: memref<9xf32, #tpu.memory_space<smem>>, %arg2: memref<1xf32, #tpu.memory_space<smem>>, %arg3: memref<1x16x128xf32, #tpu.memory_space<vmem>>, %arg4: memref<1x16x128xf32, #tpu.memory_space<vmem>>) attributes {dimension_semantics = [#tpu.dimension_semantics<parallel>], iteration_bounds = array<i64: 2>, scalar_prefetch = 0 : i64, scratch_operands = 0 : i64, tpu.core_type = #tpu.core_type<tc>, window_params = [{transform_indices = @transform_0, window_bounds = array<i64: 9>}, {transform_indices = @transform_1, window_bounds = array<i64: 1>}, {transform_indices = @transform_2, window_bounds = array<i64: 1, 16, 128>}, {transform_indices = @transform_3, window_bounds = array<i64: 1, 16, 128>}]} {
    %c0 = arith.constant 0 : index
    %c0_0 = arith.constant 0 : index
    %c0_1 = arith.constant 0 : index
    %0 = vector.load %arg3[%c0, %c0_0, %c0_1] : memref<1x16x128xf32, #tpu.memory_space<vmem>>, vector<1x16x128xf32>
    %1 = vector.shape_cast %0 : vector<1x16x128xf32> to vector<16x128xf32>
    %c0_2 = arith.constant 0 : index
    %2 = memref.load %arg1[%c0_2] : memref<9xf32, #tpu.memory_space<smem>>
    %c1 = arith.constant 1 : index
    %3 = memref.load %arg1[%c1] : memref<9xf32, #tpu.memory_space<smem>>
    %c2 = arith.constant 2 : index
    %4 = memref.load %arg1[%c2] : memref<9xf32, #tpu.memory_space<smem>>
    %c3 = arith.constant 3 : index
    %5 = memref.load %arg1[%c3] : memref<9xf32, #tpu.memory_space<smem>>
    %c4 = arith.constant 4 : index
    %6 = memref.load %arg1[%c4] : memref<9xf32, #tpu.memory_space<smem>>
    %c5 = arith.constant 5 : index
    %7 = memref.load %arg1[%c5] : memref<9xf32, #tpu.memory_space<smem>>
    %c6 = arith.constant 6 : index
    %8 = memref.load %arg1[%c6] : memref<9xf32, #tpu.memory_space<smem>>
    %c7 = arith.constant 7 : index
    %9 = memref.load %arg1[%c7] : memref<9xf32, #tpu.memory_space<smem>>
    %c8 = arith.constant 8 : index
    %10 = memref.load %arg1[%c8] : memref<9xf32, #tpu.memory_space<smem>>
    %c0_3 = arith.constant 0 : index
    %11 = memref.load %arg2[%c0_3] : memref<1xf32, #tpu.memory_space<smem>>
    %c127_i32 = arith.constant 127 : i32
    %12 = tpu.dynamic_rotate %1 by %c127_i32 dim 1 : vector<16x128xf32>, i32 -> vector<16x128xf32>
    %c126_i32 = arith.constant 126 : i32
    %13 = tpu.dynamic_rotate %1 by %c126_i32 dim 1 : vector<16x128xf32>, i32 -> vector<16x128xf32>
    %14 = vector.broadcast %2 : f32 to vector<16x128xf32>
    %15 = arith.mulf %1, %14 : vector<16x128xf32>
    %16 = vector.broadcast %11 : f32 to vector<16x128xf32>
    %17 = arith.addf %15, %16 : vector<16x128xf32>
    %18 = vector.broadcast %3 : f32 to vector<16x128xf32>
    %19 = arith.mulf %12, %18 : vector<16x128xf32>
    %20 = arith.addf %17, %19 : vector<16x128xf32>
    %21 = vector.broadcast %4 : f32 to vector<16x128xf32>
    %22 = arith.mulf %13, %21 : vector<16x128xf32>
    %23 = arith.addf %20, %22 : vector<16x128xf32>
    %c15_i32 = arith.constant 15 : i32
    %24 = tpu.dynamic_rotate %1 by %c15_i32 dim 0 : vector<16x128xf32>, i32 -> vector<16x128xf32>
    %25 = vector.broadcast %5 : f32 to vector<16x128xf32>
    %26 = arith.mulf %24, %25 : vector<16x128xf32>
    %27 = arith.addf %23, %26 : vector<16x128xf32>
    %c15_i32_4 = arith.constant 15 : i32
    %28 = tpu.dynamic_rotate %12 by %c15_i32_4 dim 0 : vector<16x128xf32>, i32 -> vector<16x128xf32>
    %29 = vector.broadcast %6 : f32 to vector<16x128xf32>
    %30 = arith.mulf %28, %29 : vector<16x128xf32>
    %31 = arith.addf %27, %30 : vector<16x128xf32>
    %c15_i32_5 = arith.constant 15 : i32
    %32 = tpu.dynamic_rotate %13 by %c15_i32_5 dim 0 : vector<16x128xf32>, i32 -> vector<16x128xf32>
    %33 = vector.broadcast %7 : f32 to vector<16x128xf32>
    %34 = arith.mulf %32, %33 : vector<16x128xf32>
    %35 = arith.addf %31, %34 : vector<16x128xf32>
    %c14_i32 = arith.constant 14 : i32
    %36 = tpu.dynamic_rotate %1 by %c14_i32 dim 0 : vector<16x128xf32>, i32 -> vector<16x128xf32>
    %37 = vector.broadcast %8 : f32 to vector<16x128xf32>
    %38 = arith.mulf %36, %37 : vector<16x128xf32>
    %39 = arith.addf %35, %38 : vector<16x128xf32>
    %c14_i32_6 = arith.constant 14 : i32
    %40 = tpu.dynamic_rotate %12 by %c14_i32_6 dim 0 : vector<16x128xf32>, i32 -> vector<16x128xf32>
    %41 = vector.broadcast %9 : f32 to vector<16x128xf32>
    %42 = arith.mulf %40, %41 : vector<16x128xf32>
    %43 = arith.addf %39, %42 : vector<16x128xf32>
    %c14_i32_7 = arith.constant 14 : i32
    %44 = tpu.dynamic_rotate %13 by %c14_i32_7 dim 0 : vector<16x128xf32>, i32 -> vector<16x128xf32>
    %45 = vector.broadcast %10 : f32 to vector<16x128xf32>
    %46 = arith.mulf %44, %45 : vector<16x128xf32>
    %47 = arith.addf %43, %46 : vector<16x128xf32>
    %c0_8 = arith.constant 0 : index
    %c0_9 = arith.constant 0 : index
    %c0_10 = arith.constant 0 : index
    %48 = vector.load %arg4[%c0_8, %c0_9, %c0_10] : memref<1x16x128xf32, #tpu.memory_space<vmem>>, vector<1x16x128xf32>
    %49 = vector.shape_cast %48 : vector<1x16x128xf32> to vector<16x128xf32>
    %50 = vector.shape_cast %47 : vector<16x128xf32> to vector<1x16x128xf32>
    tpu.vector_store %arg4[%c0_8, %c0_9, %c0_10], %50 {strides = array<i32>} : memref<1x16x128xf32, #tpu.memory_space<vmem>>, vector<1x16x128xf32>,
    return
  }
  func.func @transform_0(%arg0: i32) -> i32 {
    %c0_i32 = arith.constant 0 : i32
    %c0_i32_0 = arith.constant 0 : i32
    return %c0_i32 : i32
  }
  func.func @transform_1(%arg0: i32) -> i32 {
    %c0_i32 = arith.constant 0 : i32
    %c0_i32_0 = arith.constant 0 : i32
    return %c0_i32 : i32
  }
  func.func @transform_2(%arg0: i32) -> (i32, i32, i32) {
    %c0_i32 = arith.constant 0 : i32
    %c0_i32_0 = arith.constant 0 : i32
    %c0_i32_1 = arith.constant 0 : i32
    return %arg0, %c0_i32, %c0_i32_0 : i32, i32, i32
  }
  func.func @transform_3(%arg0: i32) -> (i32, i32, i32) {
    %c0_i32 = arith.constant 0 : i32
    %c0_i32_0 = arith.constant 0 : i32
    %c0_i32_1 = arith.constant 0 : i32
    return %arg0, %c0_i32, %c0_i32_0 : i32, i32, i32
  }
}

</mosaic_0001>

<llo_original>
// kernel: tpu_custom_call.1
$region0: #{tpu_custom_call.1}
  #allocation0 [shape = 'u32[]', space=smem, size = 0x4, offset = 0x4, fixed_abs, tag = 'smem constant byte address 0x4 - core index']
  #allocation1 [shape = 'u32[144,128]{1,0:T(1,128)}', space=vmem, size = 0x12000, scoped, tag = 'internal scratch']
  #allocation2 [shape = 'f32[1]{0:T(128)S(6)}', space=smem, size = 0x200, scoped, tag = 'scoped memory for tpu_custom_call.1']
  %s0 = inlined_call_operand.vmem [shape: f32[9], index: 0, kind: input, shape index: {}]
  %s1 = inlined_call_operand.<no memory space> [shape: f32[1], index: 1, kind: input, shape index: {}]
  %s2 = inlined_call_operand.hbm [shape: f32[2,16,128], index: 2, kind: input, shape index: {}]
  %s3 = inlined_call_operand.hbm [shape: f32[2,16,128], index: 3, kind: output, shape index: {}]
  %s4 = sld [smem:[#allocation0]]
  $region53: #{tpu_custom_call.1} parent=0
    _
  %s6 = ssub.s32 1, %s4
  %s7 = scalar_select 0, %s6, %s4
  %8 = sst [smem:[#allocation2]] %s1
  $region1: #{tpu_custom_call.1} parent=0
    #allocation3 [shape = 'u8[512]{0}', space=smem, size = 0x200, scoped, tag = 'input window, operand 0, single buffered']
    #allocation4 [shape = 's32[2]{0}', space=sflag, size = 0x8, scoped, tag = 'scoped memory for tpu_custom_call.1']
    #allocation5 [shape = 's32[2]{0}', space=sflag, size = 0x8, scoped, tag = 'scoped memory for tpu_custom_call.1']
    #allocation6 [shape = 's32[2]{0}', space=sflag, size = 0x8, scoped, tag = 'scoped memory for tpu_custom_call.1']
    #allocation7 [shape = 'u8[16384]{0}', space=vmem, size = 0x4000, scoped, tag = 'input window, operand 2']
    #allocation8 [shape = 'u8[16384]{0}', space=vmem, size = 0x4000, scoped, tag = 'output window, operand 0']
    %9 = vsyncpa [#allocation6], 0
    %10 = vsyncpa [#allocation4], 0
    %s11 = scalar_lea.sflag [#allocation4], 1
    %12 = vsyncpa %s11, 0
    %13 = vsyncpa [#allocation5], 0
    %s14 = scalar_lea.sflag [#allocation5], 1
    %15 = vsyncpa %s14, 0
    loop: start=0, step=1, limit=4
    $region2: #{tpu_custom_call.1} parent=1 // loop_pre_header
      _
    $region3: #{tpu_custom_call.1} parent=1 // loop_header
      %s17 = sphi 0, %s21
      %p18 = scmp.ge.s32.totalorder %s17, 4
      %s25 = sphi 0, %s25
      %s27 = sphi 0, %s25
      %s28 = sphi 0, %s27
      %s42 = sphi 0, %s28
      %s46 = sphi 0, %s46
      %s48 = sphi 0, %s46
      %s49 = sphi 0, %s48
      %s63 = sphi 0, %s49
      %s69 = sphi 0, %s71
      %s72 = sphi 0, %s69
      %s73 = sphi 0, %s72
      %s89 = sphi 0, %s73
      %s95 = sphi 0, %s97
      %s98 = sphi 0, %s95
      %s99 = sphi 0, %s98
      %s115 = sphi 0, %s99
    $region4: #{tpu_custom_call.1} parent=1 // loop_header_branch
      %20 = sbr.rel (%p18) target = $region8
    $region5: #{tpu_custom_call.1} parent=1 // loop_body
      %s22 = ssub.s32 %s17, 1
      %s23 = ssub.s32 %s17, 2
      %s24 = sadd.s32 %s17, 1
      %s26 = sadd.s32 %s25, 1
      %p29 = scmp.eq.s32.totalorder %s17, 1
      %p30 = scmp.ne.s32.totalorder %s25, %s27
      %p31 = scmp.eq.s32.totalorder %s17, 0
      %p32 = por %p30, %p31
      %p33 = scmp.ne.s32.totalorder %s25, %s27
      %p34 = scmp.eq.s32.totalorder %s22, 1
      %p35 = por %p33, %p34
      %p36 = scmp.ne.s32.totalorder %s27, %s28
      %p37 = scmp.eq.s32.totalorder %s22, 0
      %p38 = por %p36, %p37
      %p39 = scmp.ne.s32.totalorder %s27, %s28
      %p40 = scmp.eq.s32.totalorder %s23, 1
      %p41 = por %p39, %p40
      %p43 = scmp.ne.s32.totalorder %s28, %s42
      %p44 = scmp.eq.s32.totalorder %s23, 0
      %p45 = por %p43, %p44
      %s47 = sadd.s32 %s46, 1
      %p50 = scmp.eq.s32.totalorder %s17, 1
      %p51 = scmp.ne.s32.totalorder %s46, %s48
      %p52 = scmp.eq.s32.totalorder %s17, 0
      %p53 = por %p51, %p52
      %p54 = scmp.ne.s32.totalorder %s46, %s48
      %p55 = scmp.eq.s32.totalorder %s22, 1
      %p56 = por %p54, %p55
      %p57 = scmp.ne.s32.totalorder %s48, %s49
      %p58 = scmp.eq.s32.totalorder %s22, 0
      %p59 = por %p57, %p58
      %p60 = scmp.ne.s32.totalorder %s48, %s49
      %p61 = scmp.eq.s32.totalorder %s23, 1
      %p62 = por %p60, %p61
      %p64 = scmp.ne.s32.totalorder %s49, %s63
      %p65 = scmp.eq.s32.totalorder %s23, 0
      %p66 = por %p64, %p65
      %s67 = ssub.s32 %s17, %s24
      %p68 = scmp.eq.s32.totalorder %s67, 0
      %s70 = sadd.s32 %s69, 1
      %s71 = scalar_select %p68, %s69, %s70
      %p74 = pneg %p68
      %p75 = scmp.eq.s32.totalorder %s17, 1
      %p76 = por %p74, %p75
      %p77 = scmp.ne.s32.totalorder %s69, %s72
      %p78 = scmp.eq.s32.totalorder %s17, 0
      %p79 = por %p77, %p78
      %p80 = scmp.ne.s32.totalorder %s69, %s72
      %p81 = scmp.eq.s32.totalorder %s22, 1
      %p82 = por %p80, %p81
      %p83 = scmp.ne.s32.totalorder %s72, %s73
      %p84 = scmp.eq.s32.totalorder %s22, 0
      %p85 = por %p83, %p84
      %p86 = scmp.ne.s32.totalorder %s72, %s73
      %p87 = scmp.eq.s32.totalorder %s23, 1
      %p88 = por %p86, %p87
      %p90 = scmp.ne.s32.totalorder %s73, %s89
      %p91 = scmp.eq.s32.totalorder %s23, 0
      %p92 = por %p90, %p91
      %s93 = ssub.s32 %s17, %s24
      %p94 = scmp.eq.s32.totalorder %s93, 0
      %s96 = sadd.s32 %s95, 1
      %s97 = scalar_select %p94, %s95, %s96
      %p100 = pneg %p94
      %p101 = scmp.eq.s32.totalorder %s17, 1
      %p102 = por %p100, %p101
      %p103 = scmp.ne.s32.totalorder %s95, %s98
      %p104 = scmp.eq.s32.totalorder %s17, 0
      %p105 = por %p103, %p104
      %p106 = scmp.ne.s32.totalorder %s95, %s98
      %p107 = scmp.eq.s32.totalorder %s22, 1
      %p108 = por %p106, %p107
      %p109 = scmp.ne.s32.totalorder %s98, %s99
      %p110 = scmp.eq.s32.totalorder %s22, 0
      %p111 = por %p109, %p110
      %p112 = scmp.ne.s32.totalorder %s98, %s99
      %p113 = scmp.eq.s32.totalorder %s23, 1
      %p114 = por %p112, %p113
      %p116 = scmp.ne.s32.totalorder %s99, %s115
      %p117 = scmp.eq.s32.totalorder %s23, 0
      %p118 = por %p116, %p117
      %p119 = scmp.le.s32.totalorder 1, %s17
      %p120 = scmp.lt.s32.totalorder %s17, 3
      %p121 = pnand %p119, %p120
      %p122 = pneg %p121
      // Predicated region
      $region9: #{tpu_custom_call.1} parent=5 // pred_check
        _
      $region10: #{tpu_custom_call.1} parent=5 // pred_check_branch
        %124 = sbr.rel (%p121) target = $region12
      $region11: #{tpu_custom_call.1} parent=5 // pred_region
        %s125 = ssub.s32 %s17, 1
        // Predicated region
        $region13: #{tpu_custom_call.1} parent=11 // pred_check
          %p126 = pneg %p38
        $region14: #{tpu_custom_call.1} parent=11 // pred_check_branch
          %128 = sbr.rel (%p126) target = $region16
        $region15: #{tpu_custom_call.1} parent=11 // pred_region
          %s130 = ssub.s32 16, 16
          %131 = vsyncadd [#allocation6], %s130
          %s133 = sshll.u32 %s0, 4
          %s134 = int_to_ptr.vmem [resolvable:$true] %s133
          %136 = dma.vmem_to_smem %s134, 16, [#allocation3], [#allocation6]
        $region16: #{tpu_custom_call.1} parent=11 // pred_fallthru
          _
        // Predicated region
        $region17: #{tpu_custom_call.1} parent=11 // pred_check
          %p137 = pneg %p59
        $region18: #{tpu_custom_call.1} parent=11 // pred_check_branch
          %139 = sbr.rel (%p137) target = $region20
        $region19: #{tpu_custom_call.1} parent=11 // pred_region
          _
        $region20: #{tpu_custom_call.1} parent=11 // pred_fallthru
          _
      $region12: #{tpu_custom_call.1} parent=5 // pred_fallthru
        _
      %p140 = scmp.lt.s32.totalorder %s17, 2
      // Predicated region
      $region21: #{tpu_custom_call.1} parent=5 // pred_check
        %p141 = pneg %p140
      $region22: #{tpu_custom_call.1} parent=5 // pred_check_branch
        %143 = sbr.rel (%p141) target = $region24
      $region23: #{tpu_custom_call.1} parent=5 // pred_region
        // Predicated region
        $region25: #{tpu_custom_call.1} parent=23 // pred_check
          %p144 = pneg %p79
        $region26: #{tpu_custom_call.1} parent=23 // pred_check_branch
          %146 = sbr.rel (%p144) target = $region28
        $region27: #{tpu_custom_call.1} parent=23 // pred_region
          %s147 = sand.u32 %s69, 1
          %s148 = scalar_lea.sflag [#allocation4], %s147
          %s149 = sand.u32 %s69, 1
          %s150 = smul.addr %s149, 16
          %s151 = scalar_lea.vmem [#allocation7], %s150
          %s153 = ssub.s32 256, 256
          %154 = vsyncadd %s148, %s153
          %s155 = smul.addr %s17, 2
          %s156 = smul.addr %s155, 128
          %s157 = scalar_lea.hbm %s2, %s156
          %s158 = sshll.u32 %s151, 4
          %s159 = int_to_ptr.vmem [resolvable:$true] %s158
          %164 = dma.hbm_to_vmem [thread:$0]  %s157, 256, %s159, %s148, 128, 128, 8
        $region28: #{tpu_custom_call.1} parent=23 // pred_fallthru
          _
      $region24: #{tpu_custom_call.1} parent=5 // pred_fallthru
        _
      %p165 = scmp.le.s32.totalorder 1, %s17
      %p166 = scmp.lt.s32.totalorder %s17, 3
      %p167 = pnand %p165, %p166
      %p168 = pneg %p167
      // Predicated region
      $region29: #{tpu_custom_call.1} parent=5 // pred_check
        _
      $region30: #{tpu_custom_call.1} parent=5 // pred_check_branch
        %170 = sbr.rel (%p167) target = $region32
      $region31: #{tpu_custom_call.1} parent=5 // pred_region
        %s171 = ssub.s32 %s17, 1
        // Predicated region
        $region33: #{tpu_custom_call.1} parent=31 // pred_check
          %p172 = pneg %p38
        $region34: #{tpu_custom_call.1} parent=31 // pred_check_branch
          %174 = sbr.rel (%p172) target = $region36
        $region35: #{tpu_custom_call.1} parent=31 // pred_region
          %175 = dma.done [#allocation6], 16
        $region36: #{tpu_custom_call.1} parent=31 // pred_fallthru
          _
        %s176 = sand.u32 %s72, 1
        %s177 = scalar_lea.sflag [#allocation4], %s176
        %s178 = sand.u32 %s72, 1
        %s179 = smul.addr %s178, 16
        %s180 = scalar_lea.vmem [#allocation7], %s179
        // Predicated region
        $region37: #{tpu_custom_call.1} parent=31 // pred_check
          %p181 = pneg %p85
        $region38: #{tpu_custom_call.1} parent=31 // pred_check_branch
          %183 = sbr.rel (%p181) target = $region40
        $region39: #{tpu_custom_call.1} parent=31 // pred_region
          %184 = dma.done %s177, 256
        $region40: #{tpu_custom_call.1} parent=31 // pred_fallthru
          _
        %185 = sfence
        %p186 = pneg %p38
        %p187 = pneg %p35
        %p188 = pneg %p59
        %p189 = pneg %p56
        %s190 = sand.u32 %s72, 1
        %s191 = scalar_lea.sflag [#allocation4], %s190
        %s192 = sand.u32 %s72, 1
        %s193 = smul.addr %s192, 16
        %s194 = scalar_lea.vmem [#allocation7], %s193
        %p195 = pneg %p85
        %p196 = pneg %p82
        %p197 = pneg %p111
        %p198 = pneg %p108
        %s199 = sand.u32 %s98, 1
        %s200 = scalar_lea.sflag [#allocation5], %s199
        %s201 = sand.u32 %s98, 1
        %s202 = smul.addr %s201, 16
        %s203 = scalar_lea.vmem [#allocation8], %s202
        %v204 = vld [vmem:[%s180] sm:$0xff]
        %v205 = vld [vmem:[%s180 + $0x8] sm:$0xff]
        %s206 = sld [smem:[#allocation3]]
        %s207 = sld [smem:[#allocation3 + $0x1]]
        %s208 = sld [smem:[#allocation3 + $0x2]]
        %s209 = sld [smem:[#allocation3 + $0x3]]
        %s210 = sld [smem:[#allocation3 + $0x4]]
        %s211 = sld [smem:[#allocation3 + $0x5]]
        %s212 = sld [smem:[#allocation3 + $0x6]]
        %s213 = sld [smem:[#allocation3 + $0x7]]
        %s214 = sld [smem:[#allocation3 + $0x8]]
        %s215 = sld [smem:[#allocation2]]
        %216 = vrot.lane.b32.xlu0 %v204, 127
        %v217 = vpop.permute.xlu0 %216
        %218 = vrot.lane.b32.xlu0 %v205, 127
        %v219 = vpop.permute.xlu0 %218
        %220 = vrot.lane.b32.xlu0 %v204, 126
        %v221 = vpop.permute.xlu0 %220
        %222 = vrot.lane.b32.xlu0 %v205, 126
        %v223 = vpop.permute.xlu0 %222
        %v224 = vstv %s206
        %v225 = vmul.f32 %v204, %v224
        %v226 = vmul.f32 %v205, %v224
        %v227 = vstv %s215
        %v228 = vadd.f32 %v225, %v227
        %v229 = vadd.f32 %v226, %v227
        %v230 = vstv %s207
        %v231 = vmul.f32 %v217, %v230
        %v232 = vmul.f32 %v219, %v230
        %v233 = vadd.f32 %v228, %v231
        %v234 = vadd.f32 %v229, %v232
        %v235 = vstv %s208
        %v236 = vmul.f32 %v221, %v235
        %v237 = vmul.f32 %v223, %v235
        %v238 = vadd.f32 %v233, %v236
        %v239 = vadd.f32 %v234, %v237
        %v240 = vrot.slane %v204, 1
        %v241 = vrot.slane %v205, 1
        %v242 = vlaneseq
        %v243 = vshrl.u32 %v242, 7
        %vm244 = vcmp.lt.s32.totalorder %v243, 7
        %v245 = vsel %vm244, %v240, %v241
        %v246 = vsel %vm244, %v241, %v240
        %v247 = vstv %s209
        %v248 = vmul.f32 %v245, %v247
        %v249 = vmul.f32 %v246, %v247
        %v250 = vadd.f32 %v238, %v248
        %v251 = vadd.f32 %v239, %v249
        %v252 = vrot.slane %v217, 1
        %v253 = vrot.slane %v219, 1
        %v254 = vsel %vm244, %v252, %v253
        %v255 = vsel %vm244, %v253, %v252
        %v256 = vstv %s210
        %v257 = vmul.f32 %v254, %v256
        %v258 = vmul.f32 %v255, %v256
        %v259 = vadd.f32 %v250, %v257
        %v260 = vadd.f32 %v251, %v258
        %v261 = vrot.slane %v221, 1
        %v262 = vrot.slane %v223, 1
        %v263 = vsel %vm244, %v261, %v262
        %v264 = vsel %vm244, %v262, %v261
        %v265 = vstv %s211
        %v266 = vmul.f32 %v263, %v265
        %v267 = vmul.f32 %v264, %v265
        %v268 = vadd.f32 %v259, %v266
        %v269 = vadd.f32 %v260, %v267
        %v270 = vrot.slane %v204, 2
        %v271 = vrot.slane %v205, 2
        %vm272 = vcmp.lt.s32.totalorder %v243, 6
        %v273 = vsel %vm272, %v270, %v271
        %v274 = vsel %vm272, %v271, %v270
        %v275 = vstv %s212
        %v276 = vmul.f32 %v273, %v275
        %v277 = vmul.f32 %v274, %v275
        %v278 = vadd.f32 %v268, %v276
        %v279 = vadd.f32 %v269, %v277
        %v280 = vrot.slane %v217, 2
        %v281 = vrot.slane %v219, 2
        %v282 = vsel %vm272, %v280, %v281
        %v283 = vsel %vm272, %v281, %v280
        %v284 = vstv %s213
        %v285 = vmul.f32 %v282, %v284
        %v286 = vmul.f32 %v283, %v284
        %v287 = vadd.f32 %v278, %v285
        %v288 = vadd.f32 %v279, %v286
        %v289 = vrot.slane %v221, 2
        %v290 = vrot.slane %v223, 2
        %v291 = vsel %vm272, %v289, %v290
        %v292 = vsel %vm272, %v290, %v289
        %v293 = vstv %s214
        %v294 = vmul.f32 %v291, %v293
        %v295 = vmul.f32 %v292, %v293
        %v296 = vadd.f32 %v287, %v294
        %v297 = vadd.f32 %v288, %v295
        %298 = vst [vmem:[%s203] sm:$0xff] %v296
        %299 = vst [vmem:[%s203 + $0x8] sm:$0xff] %v297
        %s300 = sand.u32 %s98, 1
        %s301 = scalar_lea.sflag [#allocation5], %s300
        %s302 = sand.u32 %s98, 1
        %s303 = smul.addr %s302, 16
        %s304 = scalar_lea.vmem [#allocation8], %s303
        // Predicated region
        $region41: #{tpu_custom_call.1} parent=31 // pred_check
          %p305 = pneg %p108
        $region42: #{tpu_custom_call.1} parent=31 // pred_check_branch
          %307 = sbr.rel (%p305) target = $region44
        $region43: #{tpu_custom_call.1} parent=31 // pred_region
          %s309 = ssub.s32 256, 256
          %310 = vsyncadd %s301, %s309
          %s311 = smul.addr %s22, 2
          %s312 = smul.addr %s311, 128
          %s313 = scalar_lea.hbm %s3, %s312
          %s314 = sshll.u32 %s304, 4
          %s315 = int_to_ptr.vmem [resolvable:$true] %s314
          %320 = dma.vmem_to_hbm [thread:$0]  %s315, 256, %s313, %s301, 128, 128, 8
        $region44: #{tpu_custom_call.1} parent=31 // pred_fallthru
          _
      $region32: #{tpu_custom_call.1} parent=5 // pred_fallthru
        _
      %p321 = scmp.le.s32.totalorder 2, %s17
      // Predicated region
      $region45: #{tpu_custom_call.1} parent=5 // pred_check
        %p322 = pneg %p321
      $region46: #{tpu_custom_call.1} parent=5 // pred_check_branch
        %324 = sbr.rel (%p322) target = $region48
      $region47: #{tpu_custom_call.1} parent=5 // pred_region
        %s325 = ssub.s32 %s17, 2
        // Predicated region
        $region49: #{tpu_custom_call.1} parent=47 // pred_check
          %p326 = pneg %p114
        $region50: #{tpu_custom_call.1} parent=47 // pred_check_branch
          %328 = sbr.rel (%p326) target = $region52
        $region51: #{tpu_custom_call.1} parent=47 // pred_region
          %s329 = sand.u32 %s99, 1
          %s330 = scalar_lea.sflag [#allocation5], %s329
          %s331 = sand.u32 %s99, 1
          %s332 = smul.addr %s331, 16
          %s333 = scalar_lea.vmem [#allocation8], %s332
          %334 = dma.done %s330, 256
        $region52: #{tpu_custom_call.1} parent=47 // pred_fallthru
          _
      $region48: #{tpu_custom_call.1} parent=5 // pred_fallthru
        _
    $region6: #{tpu_custom_call.1} parent=1 // loop_footer
      %s21 = sadd.s32 1, %s17
    $region7: #{tpu_custom_call.1} parent=1 // loop_footer_branch
      %16 = sbr.rel target = $region3
    $region8: #{tpu_custom_call.1} parent=1 // loop_exit
      _
    %335 = vsyncpa [#allocation4], 1
    %s336 = scalar_lea.sflag [#allocation4], 1
    %337 = vsyncpa %s336, 1
    %338 = vsyncpa [#allocation5], 1
    %s339 = scalar_lea.sflag [#allocation5], 1
    %340 = vsyncpa %s339, 1
    %341 = vsyncpa [#allocation6], 1
    %s342 = scalar_lea.sflag [#allocation6], 1
    %343 = vsyncpa %s342, 1

</llo_original>
